<compile_context>
chip_gen: v5e
topology: v5e:2x2
jax: 0.10.0
libtpu: 0.0.40
codegen_flags: <defaults>
</compile_context>

<pallas_src>
import jax
import jax.numpy as jnp
from jax.experimental import pallas as pl
from jax.experimental.pallas import tpu as pltpu

IN_FEATURES = 10   # fc1 / fc2 input width
HID_FEATURES = 5   # fc1 / fc2 output width
OUT_FEATURES = 10  # fc3 output width


def _fused_affine_kernel(x1_ref, x2_ref, wa_ref, wb_ref, b_ref, out_ref):
    # v4 = x1 @ (W1@W3) + x2 @ (W2@W3) + ((b1+b2)@W3 + b3)
    acc = jnp.dot(x1_ref[...], wa_ref[...], preferred_element_type=jnp.float32)
    acc = acc + jnp.dot(x2_ref[...], wb_ref[...], preferred_element_type=jnp.float32)
    out_ref[...] = (acc + b_ref[...]).astype(out_ref.dtype)


def fold_params(w1, b1, w2, b2, w3, b3):
    """Fold the three Linear layers into two fused weights and one fused bias.

    Done once outside the kernel; HIGHEST precision keeps the fold numerically
    close to the unfused reference despite the changed summation order.
    """
    hp = jax.lax.Precision.HIGHEST
    wa = jnp.dot(w1, w3, precision=hp)                 # (10, 10)  acts on x1
    wb = jnp.dot(w2, w3, precision=hp)                 # (10, 10)  acts on x2
    bf = jnp.dot(b1 + b2, w3, precision=hp) + b3       # (1, 10)   fused bias
    return wa, wb, bf


@jax.jit
def fused_mlp(x1, x2, wa, wb, bf):
    batch = x1.shape[0]
    vmem = pl.BlockSpec(memory_space=pltpu.MemorySpace.VMEM)
    # Single grid-less call; all operands are full-array VMEM blocks, so the
    # only XLA op per invocation is the custom call itself.
    return pl.pallas_call(
        _fused_affine_kernel,
        out_shape=jax.ShapeDtypeStruct((batch, OUT_FEATURES), jnp.float32),
        in_specs=[vmem, vmem, vmem, vmem, vmem],
        out_specs=vmem,
    )(x1, x2, wa, wb, bf)


def init_params(key):
    # Deterministic init mimicking torch.nn.Linear shapes:
    #   fc1: (10 -> 5), fc2: (10 -> 5), fc3: (5 -> 10)
    # Weights stored as (in, out); biases kept 2D (1, out).
    k = jax.random.split(key, 6)
    w1 = jax.random.normal(k[0], (IN_FEATURES, HID_FEATURES), jnp.float32) * 0.1
    b1 = jax.random.normal(k[1], (1, HID_FEATURES), jnp.float32) * 0.1
    w2 = jax.random.normal(k[2], (IN_FEATURES, HID_FEATURES), jnp.float32) * 0.1
    b2 = jax.random.normal(k[3], (1, HID_FEATURES), jnp.float32) * 0.1
    w3 = jax.random.normal(k[4], (HID_FEATURES, OUT_FEATURES), jnp.float32) * 0.1
    b3 = jax.random.normal(k[5], (1, OUT_FEATURES), jnp.float32) * 0.1
    return w1, b1, w2, b2, w3, b3


if __name__ == "__main__":
    key = jax.random.PRNGKey(0)
    kx1, kx2, kp = jax.random.split(key, 3)

    # Same shapes as the PyTorch script: x1, x2 are (1, 10).
    x1 = jax.random.normal(kx1, (1, IN_FEATURES), jnp.float32)
    x2 = jax.random.normal(kx2, (1, IN_FEATURES), jnp.float32)

    w1, b1, w2, b2, w3, b3 = init_params(kp)

    # Fold the affine chain ONCE; the kernel then sees only 5 tiny operands.
    wa, wb, bf = jax.block_until_ready(fold_params(w1, b1, w2, b2, w3, b3))

    out = fused_mlp(x1, x2, wa, wb, bf)
    jax.block_until_ready(out)

    # Reference check against the un-fused 3-layer forward in plain JAX.
    ref = (jnp.dot(x1, w1) + b1) + (jnp.dot(x2, w2) + b2)
    ref = jnp.dot(ref, w3) + b3
    assert out.shape == (1, OUT_FEATURES)
    assert jnp.allclose(out, ref, atol=1e-4, rtol=1e-4), (out, ref)

    print("KERNEL_OK")
</pallas_src>

<mosaic_0001>
module attributes {stable_mosaic.version = 11 : i64} {
  func.func @_fused_affine_kernel(%arg0: memref<1x10xf32, #tpu.memory_space<vmem>>, %arg1: memref<1x10xf32, #tpu.memory_space<vmem>>, %arg2: memref<10x10xf32, #tpu.memory_space<vmem>>, %arg3: memref<10x10xf32, #tpu.memory_space<vmem>>, %arg4: memref<1x10xf32, #tpu.memory_space<vmem>>, %arg5: memref<1x10xf32, #tpu.memory_space<vmem>>) attributes {dimension_semantics = [], scalar_prefetch = 0 : i64, scratch_operands = 0 : i64, tpu.core_type = #tpu.core_type<tc>} {
    %c0 = arith.constant 0 : index
    %c0_0 = arith.constant 0 : index
    %0 = vector.load %arg0[%c0, %c0_0] : memref<1x10xf32, #tpu.memory_space<vmem>>, vector<1x10xf32>
    %c0_1 = arith.constant 0 : index
    %c0_2 = arith.constant 0 : index
    %1 = vector.load %arg2[%c0_1, %c0_2] : memref<10x10xf32, #tpu.memory_space<vmem>>, vector<10x10xf32>
    %cst = arith.constant dense<0.000000e+00> : vector<1x10xf32>
    %2 = tpu.matmul %0, %1, %cst {dimension_numbers = #tpu.dot_dimension_numbers<[1], [0], [0], [1], [0, 0, 1, 1], [], []>} : vector<1x10xf32>, vector<10x10xf32>, vector<1x10xf32> -> vector<1x10xf32>
    %c0_3 = arith.constant 0 : index
    %c0_4 = arith.constant 0 : index
    %3 = vector.load %arg1[%c0_3, %c0_4] : memref<1x10xf32, #tpu.memory_space<vmem>>, vector<1x10xf32>
    %c0_5 = arith.constant 0 : index
    %c0_6 = arith.constant 0 : index
    %4 = vector.load %arg3[%c0_5, %c0_6] : memref<10x10xf32, #tpu.memory_space<vmem>>, vector<10x10xf32>
    %cst_7 = arith.constant dense<0.000000e+00> : vector<1x10xf32>
    %5 = tpu.matmul %3, %4, %cst_7 {dimension_numbers = #tpu.dot_dimension_numbers<[1], [0], [0], [1], [0, 0, 1, 1], [], []>} : vector<1x10xf32>, vector<10x10xf32>, vector<1x10xf32> -> vector<1x10xf32>
    %6 = arith.addf %2, %5 : vector<1x10xf32>
    %c0_8 = arith.constant 0 : index
    %c0_9 = arith.constant 0 : index
    %7 = vector.load %arg4[%c0_8, %c0_9] : memref<1x10xf32, #tpu.memory_space<vmem>>, vector<1x10xf32>
    %8 = arith.addf %6, %7 : vector<1x10xf32>
    %c0_10 = arith.constant 0 : index
    %c0_11 = arith.constant 0 : index
    %9 = vector.load %arg5[%c0_10, %c0_11] : memref<1x10xf32, #tpu.memory_space<vmem>>, vector<1x10xf32>
    tpu.vector_store %arg5[%c0_10, %c0_11], %8 {strides = array<i32>} : memref<1x10xf32, #tpu.memory_space<vmem>>, vector<1x10xf32>,
    return
  }
}

</mosaic_0001>

<llo_original>
// kernel: fused_mlp.1
$region0: #{fused_mlp.1}
  #allocation0 [shape = 'u32[]', space=smem, size = 0x4, offset = 0x4, fixed_abs, tag = 'smem constant byte address 0x4 - core index']
  #allocation1 [shape = 'u32[72,128]{1,0:T(1,128)}', space=vmem, size = 0x9000, scoped, tag = 'internal scratch']
  %s0 = inlined_call_operand.hbm [shape: f32[1,10], index: 0, kind: input, shape index: {}]
  %s1 = inlined_call_operand.hbm [shape: f32[1,10], index: 1, kind: input, shape index: {}]
  %s2 = inlined_call_operand.hbm [shape: f32[10,10], index: 2, kind: input, shape index: {}]
  %s3 = inlined_call_operand.hbm [shape: f32[10,10], index: 3, kind: input, shape index: {}]
  %s4 = inlined_call_operand.vmem [shape: f32[1,10], index: 4, kind: input, shape index: {}]
  %s5 = inlined_call_operand.hbm [shape: f32[1,10], index: 5, kind: output, shape index: {}]
  %s6 = sld [smem:[#allocation0]]
  $region46: #{fused_mlp.1} parent=0
    _
  %s8 = ssub.s32 1, %s6
  %s9 = scalar_select 0, %s8, %s6
  $region1: #{fused_mlp.1} parent=0
    #allocation2 [shape = 'u8[512]{0}', space=vmem, size = 0x400, scoped, tag = 'input window, operand 0, single buffered']
    #allocation3 [shape = 's32[1]{0}', space=sflag, size = 0x4, scoped, tag = 'scoped memory for fused_mlp.1']
    #allocation4 [shape = 's32[1]{0}', space=sflag, size = 0x4, scoped, tag = 'scoped memory for fused_mlp.1']
    #allocation5 [shape = 'u8[512]{0}', space=vmem, size = 0x400, scoped, tag = 'input window, operand 1, single buffered']
    #allocation6 [shape = 's32[1]{0}', space=sflag, size = 0x4, scoped, tag = 'scoped memory for fused_mlp.1']
    #allocation7 [shape = 'u8[8192]{0}', space=vmem, size = 0x2000, scoped, tag = 'input window, operand 2, single buffered']
    #allocation8 [shape = 'u8[8192]{0}', space=vmem, size = 0x2000, scoped, tag = 'input window, operand 3, single buffered']
    #allocation9 [shape = 's32[1]{0}', space=sflag, size = 0x4, scoped, tag = 'scoped memory for fused_mlp.1']
    #allocation10 [shape = 'u8[512]{0}', space=vmem, size = 0x400, scoped, tag = 'output window, operand 0, single buffered']
    %10 = vsyncpa [#allocation3], 0
    %11 = vsyncpa [#allocation6], 0
    %12 = vsyncpa [#allocation9], 0
    %13 = vsyncpa [#allocation4], 0
    // Predicated region
    $region2: #{fused_mlp.1} parent=1 // pred_check
      _
    $region3: #{fused_mlp.1} parent=1 // pred_check_branch
      %15 = sbr.rel (0) target = $region5
    $region4: #{fused_mlp.1} parent=1 // pred_region
      %17 = vsyncadd [#allocation3], 0
      %s19 = sshll.u32 %s0, 4
      %s20 = int_to_ptr.hbm [resolvable:$true] %s19
      %s21 = sshll.u32 [#allocation2], 4
      %s22 = int_to_ptr.vmem [resolvable:$true] %s21
      %24 = dma.hbm_to_vmem [thread:$0]  %s20, 16, %s22, [#allocation3]
    $region5: #{fused_mlp.1} parent=1 // pred_fallthru
      _
    // Predicated region
    $region6: #{fused_mlp.1} parent=1 // pred_check
      _
    $region7: #{fused_mlp.1} parent=1 // pred_check_branch
      %26 = sbr.rel (0) target = $region9
    $region8: #{fused_mlp.1} parent=1 // pred_region
      %28 = vsyncadd [#allocation6], 0
      %s30 = sshll.u32 %s1, 4
      %s31 = int_to_ptr.hbm [resolvable:$true] %s30
      %s32 = sshll.u32 [#allocation5], 4
      %s33 = int_to_ptr.vmem [resolvable:$true] %s32
      %35 = dma.hbm_to_vmem [thread:$0]  %s31, 16, %s33, [#allocation6]
    $region9: #{fused_mlp.1} parent=1 // pred_fallthru
      _
    // Predicated region
    $region10: #{fused_mlp.1} parent=1 // pred_check
      _
    $region11: #{fused_mlp.1} parent=1 // pred_check_branch
      %37 = sbr.rel (0) target = $region13
    $region12: #{fused_mlp.1} parent=1 // pred_region
      %39 = vsyncadd [#allocation6], 0
      %s40 = sshll.u32 %s2, 4
      %s41 = int_to_ptr.hbm [resolvable:$true] %s40
      %s42 = sshll.u32 [#allocation7], 4
      %s43 = int_to_ptr.vmem [resolvable:$true] %s42
      %48 = dma.hbm_to_vmem [thread:$0]  %s41, 256, %s43, [#allocation6], 128, 128, 8
    $region13: #{fused_mlp.1} parent=1 // pred_fallthru
      _
    // Predicated region
    $region14: #{fused_mlp.1} parent=1 // pred_check
      _
    $region15: #{fused_mlp.1} parent=1 // pred_check_branch
      %50 = sbr.rel (0) target = $region17
    $region16: #{fused_mlp.1} parent=1 // pred_region
      %52 = vsyncadd [#allocation9], 0
      %s53 = sshll.u32 %s3, 4
      %s54 = int_to_ptr.hbm [resolvable:$true] %s53
      %s55 = sshll.u32 [#allocation8], 4
      %s56 = int_to_ptr.vmem [resolvable:$true] %s55
      %61 = dma.hbm_to_vmem [thread:$0]  %s54, 256, %s56, [#allocation9], 128, 128, 8
    $region17: #{fused_mlp.1} parent=1 // pred_fallthru
      _
    // Predicated region
    $region18: #{fused_mlp.1} parent=1 // pred_check
      _
    $region19: #{fused_mlp.1} parent=1 // pred_check_branch
      %63 = sbr.rel (0) target = $region21
    $region20: #{fused_mlp.1} parent=1 // pred_region
      _
    $region21: #{fused_mlp.1} parent=1 // pred_fallthru
      _
    // Predicated region
    $region22: #{fused_mlp.1} parent=1 // pred_check
      _
    $region23: #{fused_mlp.1} parent=1 // pred_check_branch
      %65 = sbr.rel (0) target = $region25
    $region24: #{fused_mlp.1} parent=1 // pred_region
      %67 = dma.done [#allocation3], 16
    $region25: #{fused_mlp.1} parent=1 // pred_fallthru
      _
    // Predicated region
    $region26: #{fused_mlp.1} parent=1 // pred_check
      _
    $region27: #{fused_mlp.1} parent=1 // pred_check_branch
      %69 = sbr.rel (0) target = $region29
    $region28: #{fused_mlp.1} parent=1 // pred_region
      %71 = dma.done [#allocation6], 16
    $region29: #{fused_mlp.1} parent=1 // pred_fallthru
      _
    // Predicated region
    $region30: #{fused_mlp.1} parent=1 // pred_check
      _
    $region31: #{fused_mlp.1} parent=1 // pred_check_branch
      %73 = sbr.rel (0) target = $region33
    $region32: #{fused_mlp.1} parent=1 // pred_region
      %75 = dma.done [#allocation6], 256
    $region33: #{fused_mlp.1} parent=1 // pred_fallthru
      _
    // Predicated region
    $region34: #{fused_mlp.1} parent=1 // pred_check
      _
    $region35: #{fused_mlp.1} parent=1 // pred_check_branch
      %77 = sbr.rel (0) target = $region37
    $region36: #{fused_mlp.1} parent=1 // pred_region
      %79 = dma.done [#allocation9], 256
    $region37: #{fused_mlp.1} parent=1 // pred_fallthru
      _
    %v80 = vld [vmem:[#allocation2] sm:$0x1]
    %v81 = vld [vmem:[#allocation7] sm:$0xff]
    %v82 = vld [vmem:[#allocation7 + $0x8] sm:$0x3]
    %v83 = vld [vmem:[#allocation5] sm:$0x1]
    %v84 = vld [vmem:[#allocation8] sm:$0xff]
    %v85 = vld [vmem:[#allocation8 + $0x8] sm:$0x3]
    %vm86 = vcmask 80896
    %v88 = vsel %vm86, %v83, 0
    %vm90 = vcmask 1041408
    %v92 = vsel %vm90, %v85, 0
    %94 = vmatpush.msra.mxu0 0.0
    %95 = vmatpush.msra.mxu0 0.0
    %96 = vmatpush.msra.mxu0 0.0
    %97 = vmatpush.msra.mxu0 0.0
    %98 = vmatpush.msra.mxu0 0.0
    %99 = vmatpush.msra.mxu0 0.0
    %100 = vmatpush.msra.mxu0 0.0
    %101 = vmatpush.msra.mxu0 0.0
    %102 = vmatpush.msra.mxu0 0.0
    %103 = vmatpush.msra.mxu0 0.0
    %104 = vmatpush.msra.mxu0 0.0
    %105 = vmatpush.msra.mxu0 0.0
    %106 = vmatpush.msra.mxu0 0.0
    %107 = vmatpush.msra.mxu0 0.0
    %108 = vmatpush.msra.mxu0 %v92
    %109 = vmatpush.msra.mxu0 %v84
    %110 = vmatmul.f32.gmra.mxu0 %v88
    %v111 = vpop.f32.mrf.mxu0
    %v112 = vadd.f32 0.0, %v111
    %113 = vdwg.mxu0
    %v115 = vsel %vm86, %v80, 0
    %v118 = vsel %vm90, %v82, 0
    %120 = vmatpush.msra.mxu0 0.0
    %121 = vmatpush.msra.mxu0 0.0
    %122 = vmatpush.msra.mxu0 0.0
    %123 = vmatpush.msra.mxu0 0.0
    %124 = vmatpush.msra.mxu0 0.0
    %125 = vmatpush.msra.mxu0 0.0
    %126 = vmatpush.msra.mxu0 0.0
    %127 = vmatpush.msra.mxu0 0.0
    %128 = vmatpush.msra.mxu0 0.0
    %129 = vmatpush.msra.mxu0 0.0
    %130 = vmatpush.msra.mxu0 0.0
    %131 = vmatpush.msra.mxu0 0.0
    %132 = vmatpush.msra.mxu0 0.0
    %133 = vmatpush.msra.mxu0 0.0
    %134 = vmatpush.msra.mxu0 %v118
    %135 = vmatpush.msra.mxu0 %v81
    %136 = vmatmul.f32.gmra.mxu0 %v115
    %v137 = vpop.f32.mrf.mxu0
    %v138 = vadd.f32 %v112, %v137
    %139 = vdwg.mxu0
    %v140 = vld [vmem:[%s4] sm:$0x1]
    %v141 = vadd.f32 %v138, %v140
    %vm142 = vcmask 73728
    %143 = vst.msk [vmem:[#allocation10] sm:$0x1] %vm142, %v141
    // Predicated region
    $region38: #{fused_mlp.1} parent=1 // pred_check
      _
    $region39: #{fused_mlp.1} parent=1 // pred_check_branch
      %145 = sbr.rel (0) target = $region41
    $region40: #{fused_mlp.1} parent=1 // pred_region
      %147 = vsyncadd [#allocation4], 0
      %s149 = sshll.u32 [#allocation10], 4
      %s150 = int_to_ptr.vmem [resolvable:$true] %s149
      %s151 = sshll.u32 %s5, 4
      %s152 = int_to_ptr.hbm [resolvable:$true] %s151
      %154 = dma.vmem_to_hbm [thread:$0]  %s150, 16, %s152, [#allocation4]
    $region41: #{fused_mlp.1} parent=1 // pred_fallthru
      _
    // Predicated region
    $region42: #{fused_mlp.1} parent=1 // pred_check
      _
    $region43: #{fused_mlp.1} parent=1 // pred_check_branch
      %156 = sbr.rel (0) target = $region45
    $region44: #{fused_mlp.1} parent=1 // pred_region
      %158 = dma.done [#allocation4], 16
    $region45: #{fused_mlp.1} parent=1 // pred_fallthru
      _
    %159 = vsyncpa [#allocation3], 1
    %160 = vsyncpa [#allocation6], 1
    %161 = vsyncpa [#allocation9], 1
    %162 = vsyncpa [#allocation4], 1

</llo_original>
